<compile_context>
chip_gen: v7x
topology: tpu7x:2x2x1
jax: 0.10.0
libtpu: 0.0.40
codegen_flags: <defaults>
</compile_context>

<pallas_src>
import functools

import jax
import jax.numpy as jnp
from jax.experimental import pallas as pl
from jax.experimental.pallas import tpu as pltpu


def sgu_kernel(x1_ref, x2_ref, gamma_ref, beta_ref, w_sp_ref, b_sp_ref, o_ref,
               *, block_b):
    # Weights are index-invariant across the grid -> loaded once per step.
    w_sp = w_sp_ref[...]          # (L, L)  bf16
    gamma = gamma_ref[...]        # (1, d_out) f32
    beta = beta_ref[...]          # (1, d_out) f32
    b_sp = b_sp_ref[...]          # (L, 1)  f32

    # Static unroll over the Bt sequences of this block: keeps the live
    # intermediate at (L, d_out) instead of (Bt, L, d_out).
    for bb in range(block_b):
        x2 = x2_ref[bb]           # (L, d_out) f32

        # LayerNorm over the feature dim (eps = 1e-5), affine — all in f32.
        mean = jnp.mean(x2, axis=-1, keepdims=True)
        var = jnp.mean(jnp.square(x2 - mean), axis=-1, keepdims=True)
        v = (x2 - mean) * jax.lax.rsqrt(var + 1e-5)
        v = v * gamma + beta

        # Spatial (Toeplitz) mixing along the sequence axis on the MXU:
        # bf16 operands, f32 accumulation. conv1d(kernel=1) bias b is per
        # sequence position -> broadcast as (L, 1).
        sp = jnp.dot(w_sp, v.astype(jnp.bfloat16),
                     preferred_element_type=jnp.float32)
        sp = sp + b_sp

        # TODO(synk): `act` is a constructor argument of SpatialGatingUnit with
        # no default; we assume nn.Identity() (the standard gMLP choice).
        o_ref[bb] = (x1_ref[bb] * sp).astype(o_ref.dtype)


def toeplitz_spatial_weight_matrix(w, max_len):
    """W[i, j] = w[max_len - 1 + j - i]; identical to the PyTorch construction."""
    idx = jnp.arange(max_len)
    return w[max_len - 1 + idx[None, :] - idx[:, None]]          # (L, L)


def spatial_gating_unit(x, w, b, gamma, beta, *, block_b=None):
    """x: (B, L, d_in) f32. w: (2L-1,), b: (L,), gamma/beta: (d_out,)."""
    B, L, d_in = x.shape
    d_out = d_in // 2

    w_sp = toeplitz_spatial_weight_matrix(w, L).astype(jnp.bfloat16)  # (L, L)
    b_sp = b.reshape(L, 1).astype(jnp.float32)
    gamma2 = gamma.reshape(1, d_out).astype(jnp.float32)
    beta2 = beta.reshape(1, d_out).astype(jnp.float32)

    if block_b is None:
        block_b = next(bt for bt in (8, 4, 2, 1) if B % bt == 0)
    bt = block_b
    assert B % bt == 0, "batch must be divisible by the batch tile"
    grid = (B // bt,)

    if d_out % 128 == 0:
        # Zero-copy chunk: fetch the two lane-aligned halves of x as two views
        # of the same array (block index 0 / 1 along the feature axis).
        x1_in, x2_in = x, x
        x1_spec = pl.BlockSpec((bt, L, d_out), lambda i: (i, 0, 0))
        x2_spec = pl.BlockSpec((bt, L, d_out), lambda i: (i, 0, 1))
    else:
        # Fallback: split in the wrapper (plain XLA) so the kernel never does a
        # lane-dim chunk and blocks cover full (L, d_out) extents.
        x1_in = x[..., :d_out]
        x2_in = x[..., d_out:]
        spec = pl.BlockSpec((bt, L, d_out), lambda i: (i, 0, 0))
        x1_spec = x2_spec = spec

    kernel = functools.partial(sgu_kernel, block_b=bt)

    # Advisory cost estimate for the XLA scheduler.
    flops = 2 * B * L * L * d_out + 10 * B * L * d_out
    bytes_accessed = (B * L * d_in + B * L * d_out) * 4 + L * L * 2 \
        + (L + 2 * d_out) * 4
    cost = pl.CostEstimate(flops=flops, transcendentals=B * L,
                           bytes_accessed=bytes_accessed)

    return pl.pallas_call(
        kernel,
        out_shape=jax.ShapeDtypeStruct((B, L, d_out), x.dtype),
        grid=grid,
        in_specs=[
            x1_spec,
            x2_spec,
            pl.BlockSpec((1, d_out), lambda i: (0, 0)),   # gamma
            pl.BlockSpec((1, d_out), lambda i: (0, 0)),   # beta
            pl.BlockSpec((L, L), lambda i: (0, 0)),       # w_sp (bf16)
            pl.BlockSpec((L, 1), lambda i: (0, 0)),       # b_sp
        ],
        out_specs=pl.BlockSpec((bt, L, d_out), lambda i: (i, 0, 0)),
        compiler_params=pltpu.CompilerParams(
            dimension_semantics=("parallel",),
            vmem_limit_bytes=48 << 20,
        ),
        cost_estimate=cost,
    )(x1_in, x2_in, gamma2, beta2, w_sp, b_sp)


def make_sgu_params(key, d_in, max_len, init_eps=1e-3):
    """Mirrors SpatialGatingUnit.__init__ (uniform w, b=1, LN gamma=1/beta=0)."""
    d_out = d_in // 2
    eps = init_eps / max_len
    w = jax.random.uniform(key, (2 * max_len - 1,), jnp.float32,
                           minval=-eps, maxval=eps)
    b = jnp.ones((max_len,), jnp.float32)
    gamma = jnp.ones((d_out,), jnp.float32)
    beta = jnp.zeros((d_out,), jnp.float32)
    return dict(w=w, b=b, gamma=gamma, beta=beta)


def sgu_ref(x, w, b, gamma, beta):
    """Pure-JAX f32 reference of SpatialGatingUnit.forward (act = identity)."""
    B, L, d_in = x.shape
    d_out = d_in // 2
    x1, x2 = x[..., :d_out], x[..., d_out:]
    mean = jnp.mean(x2, axis=-1, keepdims=True)
    var = jnp.mean(jnp.square(x2 - mean), axis=-1, keepdims=True)
    v = (x2 - mean) * jax.lax.rsqrt(var + 1e-5)
    v = v * gamma + beta
    W = toeplitz_spatial_weight_matrix(w, L)
    v = jnp.einsum("lk,bkd->bld", W, v) + b[None, :, None]
    return x1 * v


if __name__ == "__main__":
    # Small but lane-aligned shapes: d_out = 128 (lane-dense stores), L = 16.
    B, max_len, d_in = 8, 16, 256

    key = jax.random.PRNGKey(0)
    k_x, k_p = jax.random.split(key)
    x = jax.random.normal(k_x, (B, max_len, d_in), jnp.float32)
    p = make_sgu_params(k_p, d_in, max_len)

    # block_b=4 -> grid=(2,): exercises the batch-tiled pipeline / index maps.
    out = spatial_gating_unit(x, p["w"], p["b"], p["gamma"], p["beta"],
                              block_b=4)
    out = jax.block_until_ready(out)

    ref = sgu_ref(x, p["w"], p["b"], p["gamma"], p["beta"])
    assert out.shape == (B, max_len, d_in // 2)
    # bf16 matmul operands with f32 accumulation -> loosened tolerance.
    assert jnp.allclose(out, ref, atol=2e-2, rtol=2e-2), \
        float(jnp.max(jnp.abs(out - ref)))

    print("KERNEL_OK")
</pallas_src>

<mosaic_0001>
module attributes {stable_mosaic.version = 11 : i64} {
  func.func @sgu_kernel(%arg0: i32, %arg1: memref<4x16x128xf32, #tpu.memory_space<vmem>>, %arg2: memref<4x16x128xf32, #tpu.memory_space<vmem>>, %arg3: memref<1x128xf32, #tpu.memory_space<vmem>>, %arg4: memref<1x128xf32, #tpu.memory_space<vmem>>, %arg5: memref<16x16xbf16, #tpu.memory_space<vmem>>, %arg6: memref<16x1xf32, #tpu.memory_space<vmem>>, %arg7: memref<4x16x128xf32, #tpu.memory_space<vmem>>) attributes {dimension_semantics = [#tpu.dimension_semantics<parallel>], iteration_bounds = array<i64: 2>, scalar_prefetch = 0 : i64, scratch_operands = 0 : i64, tpu.core_type = #tpu.core_type<tc>, window_params = [{transform_indices = @transform_0, window_bounds = array<i64: 4, 16, 128>}, {transform_indices = @transform_1, window_bounds = array<i64: 4, 16, 128>}, {pipeline_mode = #tpu.pipeline_mode<synchronous>, transform_indices = @transform_2, window_bounds = array<i64: 1, 128>}, {pipeline_mode = #tpu.pipeline_mode<synchronous>, transform_indices = @transform_3, window_bounds = array<i64: 1, 128>}, {pipeline_mode = #tpu.pipeline_mode<synchronous>, transform_indices = @transform_4, window_bounds = array<i64: 16, 16>}, {pipeline_mode = #tpu.pipeline_mode<synchronous>, transform_indices = @transform_5, window_bounds = array<i64: 16, 1>}, {transform_indices = @transform_6, window_bounds = array<i64: 4, 16, 128>}]} {
    %c0 = arith.constant 0 : index
    %c0_0 = arith.constant 0 : index
    %0 = vector.load %arg5[%c0, %c0_0] : memref<16x16xbf16, #tpu.memory_space<vmem>>, vector<16x16xbf16>
    %c0_1 = arith.constant 0 : index
    %c0_2 = arith.constant 0 : index
    %1 = vector.load %arg3[%c0_1, %c0_2] : memref<1x128xf32, #tpu.memory_space<vmem>>, vector<1x128xf32>
    %c0_3 = arith.constant 0 : index
    %c0_4 = arith.constant 0 : index
    %2 = vector.load %arg4[%c0_3, %c0_4] : memref<1x128xf32, #tpu.memory_space<vmem>>, vector<1x128xf32>
    %c0_5 = arith.constant 0 : index
    %c0_6 = arith.constant 0 : index
    %3 = vector.load %arg6[%c0_5, %c0_6] : memref<16x1xf32, #tpu.memory_space<vmem>>, vector<16x1xf32>
    %c0_7 = arith.constant 0 : index
    %c0_8 = arith.constant 0 : index
    %c0_9 = arith.constant 0 : index
    %4 = vector.load %arg2[%c0_7, %c0_8, %c0_9] : memref<4x16x128xf32, #tpu.memory_space<vmem>>, vector<1x16x128xf32>
    %5 = vector.shape_cast %4 : vector<1x16x128xf32> to vector<16x128xf32>
    %cst = arith.constant dense<0.000000e+00> : vector<16xf32>
    %6 = vector.multi_reduction <add>, %5, %cst [1] : vector<16x128xf32> to vector<16xf32>
    %7 = vector.shape_cast %6 : vector<16xf32> to vector<16x1xf32>
    %cst_10 = arith.constant 1.280000e+02 : f32
    %8 = vector.broadcast %cst_10 : f32 to vector<16x1xf32>
    %9 = arith.divf %7, %8 : vector<16x1xf32>
    %10 = vector.broadcast %9 : vector<16x1xf32> to vector<16x128xf32>
    %11 = arith.subf %5, %10 : vector<16x128xf32>
    %12 = arith.mulf %11, %11 : vector<16x128xf32>
    %cst_11 = arith.constant dense<0.000000e+00> : vector<16xf32>
    %13 = vector.multi_reduction <add>, %12, %cst_11 [1] : vector<16x128xf32> to vector<16xf32>
    %14 = vector.shape_cast %13 : vector<16xf32> to vector<16x1xf32>
    %cst_12 = arith.constant 1.280000e+02 : f32
    %15 = vector.broadcast %cst_12 : f32 to vector<16x1xf32>
    %16 = arith.divf %14, %15 : vector<16x1xf32>
    %17 = vector.broadcast %9 : vector<16x1xf32> to vector<16x128xf32>
    %18 = arith.subf %5, %17 : vector<16x128xf32>
    %cst_13 = arith.constant 9.99999974E-6 : f32
    %19 = vector.broadcast %cst_13 : f32 to vector<16x1xf32>
    %20 = arith.addf %16, %19 : vector<16x1xf32>
    %21 = math.rsqrt %20 : vector<16x1xf32>
    %22 = vector.broadcast %21 : vector<16x1xf32> to vector<16x128xf32>
    %23 = arith.mulf %18, %22 : vector<16x128xf32>
    %24 = vector.broadcast %1 : vector<1x128xf32> to vector<16x128xf32>
    %25 = arith.mulf %23, %24 : vector<16x128xf32>
    %26 = vector.broadcast %2 : vector<1x128xf32> to vector<16x128xf32>
    %27 = arith.addf %25, %26 : vector<16x128xf32>
    %28 = arith.truncf %27 : vector<16x128xf32> to vector<16x128xbf16>
    %cst_14 = arith.constant dense<0.000000e+00> : vector<16x128xf32>
    %29 = tpu.matmul %0, %28, %cst_14 {dimension_numbers = #tpu.dot_dimension_numbers<[1], [0], [0], [1], [0, 0, 1, 1], [], []>} : vector<16x16xbf16>, vector<16x128xbf16>, vector<16x128xf32> -> vector<16x128xf32>
    %30 = vector.broadcast %3 : vector<16x1xf32> to vector<16x128xf32>
    %31 = arith.addf %29, %30 : vector<16x128xf32>
    %c0_15 = arith.constant 0 : index
    %c0_16 = arith.constant 0 : index
    %c0_17 = arith.constant 0 : index
    %32 = vector.load %arg1[%c0_15, %c0_16, %c0_17] : memref<4x16x128xf32, #tpu.memory_space<vmem>>, vector<1x16x128xf32>
    %33 = vector.shape_cast %32 : vector<1x16x128xf32> to vector<16x128xf32>
    %34 = arith.mulf %33, %31 : vector<16x128xf32>
    %c0_18 = arith.constant 0 : index
    %c0_19 = arith.constant 0 : index
    %c0_20 = arith.constant 0 : index
    %35 = vector.load %arg7[%c0_18, %c0_19, %c0_20] : memref<4x16x128xf32, #tpu.memory_space<vmem>>, vector<1x16x128xf32>
    %36 = vector.shape_cast %35 : vector<1x16x128xf32> to vector<16x128xf32>
    %37 = vector.shape_cast %34 : vector<16x128xf32> to vector<1x16x128xf32>
    tpu.vector_store %arg7[%c0_18, %c0_19, %c0_20], %37 {strides = array<i32>} : memref<4x16x128xf32, #tpu.memory_space<vmem>>, vector<1x16x128xf32>,
    %c1 = arith.constant 1 : index
    %c0_21 = arith.constant 0 : index
    %c0_22 = arith.constant 0 : index
    %38 = vector.load %arg2[%c1, %c0_21, %c0_22] : memref<4x16x128xf32, #tpu.memory_space<vmem>>, vector<1x16x128xf32>
    %39 = vector.shape_cast %38 : vector<1x16x128xf32> to vector<16x128xf32>
    %cst_23 = arith.constant dense<0.000000e+00> : vector<16xf32>
    %40 = vector.multi_reduction <add>, %39, %cst_23 [1] : vector<16x128xf32> to vector<16xf32>
    %41 = vector.shape_cast %40 : vector<16xf32> to vector<16x1xf32>
    %cst_24 = arith.constant 1.280000e+02 : f32
    %42 = vector.broadcast %cst_24 : f32 to vector<16x1xf32>
    %43 = arith.divf %41, %42 : vector<16x1xf32>
    %44 = vector.broadcast %43 : vector<16x1xf32> to vector<16x128xf32>
    %45 = arith.subf %39, %44 : vector<16x128xf32>
    %46 = arith.mulf %45, %45 : vector<16x128xf32>
    %cst_25 = arith.constant dense<0.000000e+00> : vector<16xf32>
    %47 = vector.multi_reduction <add>, %46, %cst_25 [1] : vector<16x128xf32> to vector<16xf32>
    %48 = vector.shape_cast %47 : vector<16xf32> to vector<16x1xf32>
    %cst_26 = arith.constant 1.280000e+02 : f32
    %49 = vector.broadcast %cst_26 : f32 to vector<16x1xf32>
    %50 = arith.divf %48, %49 : vector<16x1xf32>
    %51 = vector.broadcast %43 : vector<16x1xf32> to vector<16x128xf32>
    %52 = arith.subf %39, %51 : vector<16x128xf32>
    %cst_27 = arith.constant 9.99999974E-6 : f32
    %53 = vector.broadcast %cst_27 : f32 to vector<16x1xf32>
    %54 = arith.addf %50, %53 : vector<16x1xf32>
    %55 = math.rsqrt %54 : vector<16x1xf32>
    %56 = vector.broadcast %55 : vector<16x1xf32> to vector<16x128xf32>
    %57 = arith.mulf %52, %56 : vector<16x128xf32>
    %58 = vector.broadcast %1 : vector<1x128xf32> to vector<16x128xf32>
    %59 = arith.mulf %57, %58 : vector<16x128xf32>
    %60 = vector.broadcast %2 : vector<1x128xf32> to vector<16x128xf32>
    %61 = arith.addf %59, %60 : vector<16x128xf32>
    %62 = arith.truncf %61 : vector<16x128xf32> to vector<16x128xbf16>
    %cst_28 = arith.constant dense<0.000000e+00> : vector<16x128xf32>
    %63 = tpu.matmul %0, %62, %cst_28 {dimension_numbers = #tpu.dot_dimension_numbers<[1], [0], [0], [1], [0, 0, 1, 1], [], []>} : vector<16x16xbf16>, vector<16x128xbf16>, vector<16x128xf32> -> vector<16x128xf32>
    %64 = vector.broadcast %3 : vector<16x1xf32> to vector<16x128xf32>
    %65 = arith.addf %63, %64 : vector<16x128xf32>
    %c1_29 = arith.constant 1 : index
    %c0_30 = arith.constant 0 : index
    %c0_31 = arith.constant 0 : index
    %66 = vector.load %arg1[%c1_29, %c0_30, %c0_31] : memref<4x16x128xf32, #tpu.memory_space<vmem>>, vector<1x16x128xf32>
    %67 = vector.shape_cast %66 : vector<1x16x128xf32> to vector<16x128xf32>
    %68 = arith.mulf %67, %65 : vector<16x128xf32>
    %c1_32 = arith.constant 1 : index
    %c0_33 = arith.constant 0 : index
    %c0_34 = arith.constant 0 : index
    %69 = vector.load %arg7[%c1_32, %c0_33, %c0_34] : memref<4x16x128xf32, #tpu.memory_space<vmem>>, vector<1x16x128xf32>
    %70 = vector.shape_cast %69 : vector<1x16x128xf32> to vector<16x128xf32>
    %71 = vector.shape_cast %68 : vector<16x128xf32> to vector<1x16x128xf32>
    tpu.vector_store %arg7[%c1_32, %c0_33, %c0_34], %71 {strides = array<i32>} : memref<4x16x128xf32, #tpu.memory_space<vmem>>, vector<1x16x128xf32>,
    %c2 = arith.constant 2 : index
    %c0_35 = arith.constant 0 : index
    %c0_36 = arith.constant 0 : index
    %72 = vector.load %arg2[%c2, %c0_35, %c0_36] : memref<4x16x128xf32, #tpu.memory_space<vmem>>, vector<1x16x128xf32>
    %73 = vector.shape_cast %72 : vector<1x16x128xf32> to vector<16x128xf32>
    %cst_37 = arith.constant dense<0.000000e+00> : vector<16xf32>
    %74 = vector.multi_reduction <add>, %73, %cst_37 [1] : vector<16x128xf32> to vector<16xf32>
    %75 = vector.shape_cast %74 : vector<16xf32> to vector<16x1xf32>
    %cst_38 = arith.constant 1.280000e+02 : f32
    %76 = vector.broadcast %cst_38 : f32 to vector<16x1xf32>
    %77 = arith.divf %75, %76 : vector<16x1xf32>
    %78 = vector.broadcast %77 : vector<16x1xf32> to vector<16x128xf32>
    %79 = arith.subf %73, %78 : vector<16x128xf32>
    %80 = arith.mulf %79, %79 : vector<16x128xf32>
    %cst_39 = arith.constant dense<0.000000e+00> : vector<16xf32>
    %81 = vector.multi_reduction <add>, %80, %cst_39 [1] : vector<16x128xf32> to vector<16xf32>
    %82 = vector.shape_cast %81 : vector<16xf32> to vector<16x1xf32>
    %cst_40 = arith.constant 1.280000e+02 : f32
    %83 = vector.broadcast %cst_40 : f32 to vector<16x1xf32>
    %84 = arith.divf %82, %83 : vector<16x1xf32>
    %85 = vector.broadcast %77 : vector<16x1xf32> to vector<16x128xf32>
    %86 = arith.subf %73, %85 : vector<16x128xf32>
    %cst_41 = arith.constant 9.99999974E-6 : f32
    %87 = vector.broadcast %cst_41 : f32 to vector<16x1xf32>
    %88 = arith.addf %84, %87 : vector<16x1xf32>
    %89 = math.rsqrt %88 : vector<16x1xf32>
    %90 = vector.broadcast %89 : vector<16x1xf32> to vector<16x128xf32>
    %91 = arith.mulf %86, %90 : vector<16x128xf32>
    %92 = vector.broadcast %1 : vector<1x128xf32> to vector<16x128xf32>
    %93 = arith.mulf %91, %92 : vector<16x128xf32>
    %94 = vector.broadcast %2 : vector<1x128xf32> to vector<16x128xf32>
    %95 = arith.addf %93, %94 : vector<16x128xf32>
    %96 = arith.truncf %95 : vector<16x128xf32> to vector<16x128xbf16>
    %cst_42 = arith.constant dense<0.000000e+00> : vector<16x128xf32>
    %97 = tpu.matmul %0, %96, %cst_42 {dimension_numbers = #tpu.dot_dimension_numbers<[1], [0], [0], [1], [0, 0, 1, 1], [], []>} : vector<16x16xbf16>, vector<16x128xbf16>, vector<16x128xf32> -> vector<16x128xf32>
    %98 = vector.broadcast %3 : vector<16x1xf32> to vector<16x128xf32>
    %99 = arith.addf %97, %98 : vector<16x128xf32>
    %c2_43 = arith.constant 2 : index
    %c0_44 = arith.constant 0 : index
    %c0_45 = arith.constant 0 : index
    %100 = vector.load %arg1[%c2_43, %c0_44, %c0_45] : memref<4x16x128xf32, #tpu.memory_space<vmem>>, vector<1x16x128xf32>
    %101 = vector.shape_cast %100 : vector<1x16x128xf32> to vector<16x128xf32>
    %102 = arith.mulf %101, %99 : vector<16x128xf32>
    %c2_46 = arith.constant 2 : index
    %c0_47 = arith.constant 0 : index
    %c0_48 = arith.constant 0 : index
    %103 = vector.load %arg7[%c2_46, %c0_47, %c0_48] : memref<4x16x128xf32, #tpu.memory_space<vmem>>, vector<1x16x128xf32>
    %104 = vector.shape_cast %103 : vector<1x16x128xf32> to vector<16x128xf32>
    %105 = vector.shape_cast %102 : vector<16x128xf32> to vector<1x16x128xf32>
    tpu.vector_store %arg7[%c2_46, %c0_47, %c0_48], %105 {strides = array<i32>} : memref<4x16x128xf32, #tpu.memory_space<vmem>>, vector<1x16x128xf32>,
    %c3 = arith.constant 3 : index
    %c0_49 = arith.constant 0 : index
    %c0_50 = arith.constant 0 : index
    %106 = vector.load %arg2[%c3, %c0_49, %c0_50] : memref<4x16x128xf32, #tpu.memory_space<vmem>>, vector<1x16x128xf32>
    %107 = vector.shape_cast %106 : vector<1x16x128xf32> to vector<16x128xf32>
    %cst_51 = arith.constant dense<0.000000e+00> : vector<16xf32>
    %108 = vector.multi_reduction <add>, %107, %cst_51 [1] : vector<16x128xf32> to vector<16xf32>
    %109 = vector.shape_cast %108 : vector<16xf32> to vector<16x1xf32>
    %cst_52 = arith.constant 1.280000e+02 : f32
    %110 = vector.broadcast %cst_52 : f32 to vector<16x1xf32>
    %111 = arith.divf %109, %110 : vector<16x1xf32>
    %112 = vector.broadcast %111 : vector<16x1xf32> to vector<16x128xf32>
    %113 = arith.subf %107, %112 : vector<16x128xf32>
    %114 = arith.mulf %113, %113 : vector<16x128xf32>
    %cst_53 = arith.constant dense<0.000000e+00> : vector<16xf32>
    %115 = vector.multi_reduction <add>, %114, %cst_53 [1] : vector<16x128xf32> to vector<16xf32>
    %116 = vector.shape_cast %115 : vector<16xf32> to vector<16x1xf32>
    %cst_54 = arith.constant 1.280000e+02 : f32
    %117 = vector.broadcast %cst_54 : f32 to vector<16x1xf32>
    %118 = arith.divf %116, %117 : vector<16x1xf32>
    %119 = vector.broadcast %111 : vector<16x1xf32> to vector<16x128xf32>
    %120 = arith.subf %107, %119 : vector<16x128xf32>
    %cst_55 = arith.constant 9.99999974E-6 : f32
    %121 = vector.broadcast %cst_55 : f32 to vector<16x1xf32>
    %122 = arith.addf %118, %121 : vector<16x1xf32>
    %123 = math.rsqrt %122 : vector<16x1xf32>
    %124 = vector.broadcast %123 : vector<16x1xf32> to vector<16x128xf32>
    %125 = arith.mulf %120, %124 : vector<16x128xf32>
    %126 = vector.broadcast %1 : vector<1x128xf32> to vector<16x128xf32>
    %127 = arith.mulf %125, %126 : vector<16x128xf32>
    %128 = vector.broadcast %2 : vector<1x128xf32> to vector<16x128xf32>
    %129 = arith.addf %127, %128 : vector<16x128xf32>
    %130 = arith.truncf %129 : vector<16x128xf32> to vector<16x128xbf16>
    %cst_56 = arith.constant dense<0.000000e+00> : vector<16x128xf32>
    %131 = tpu.matmul %0, %130, %cst_56 {dimension_numbers = #tpu.dot_dimension_numbers<[1], [0], [0], [1], [0, 0, 1, 1], [], []>} : vector<16x16xbf16>, vector<16x128xbf16>, vector<16x128xf32> -> vector<16x128xf32>
    %132 = vector.broadcast %3 : vector<16x1xf32> to vector<16x128xf32>
    %133 = arith.addf %131, %132 : vector<16x128xf32>
    %c3_57 = arith.constant 3 : index
    %c0_58 = arith.constant 0 : index
    %c0_59 = arith.constant 0 : index
    %134 = vector.load %arg1[%c3_57, %c0_58, %c0_59] : memref<4x16x128xf32, #tpu.memory_space<vmem>>, vector<1x16x128xf32>
    %135 = vector.shape_cast %134 : vector<1x16x128xf32> to vector<16x128xf32>
    %136 = arith.mulf %135, %133 : vector<16x128xf32>
    %c3_60 = arith.constant 3 : index
    %c0_61 = arith.constant 0 : index
    %c0_62 = arith.constant 0 : index
    %137 = vector.load %arg7[%c3_60, %c0_61, %c0_62] : memref<4x16x128xf32, #tpu.memory_space<vmem>>, vector<1x16x128xf32>
    %138 = vector.shape_cast %137 : vector<1x16x128xf32> to vector<16x128xf32>
    %139 = vector.shape_cast %136 : vector<16x128xf32> to vector<1x16x128xf32>
    tpu.vector_store %arg7[%c3_60, %c0_61, %c0_62], %139 {strides = array<i32>} : memref<4x16x128xf32, #tpu.memory_space<vmem>>, vector<1x16x128xf32>,
    return
  }
  func.func @transform_0(%arg0: i32) -> (i32, i32, i32) {
    %c0_i32 = arith.constant 0 : i32
    %c0_i32_0 = arith.constant 0 : i32
    %c0_i32_1 = arith.constant 0 : i32
    return %arg0, %c0_i32, %c0_i32_0 : i32, i32, i32
  }
  func.func @transform_1(%arg0: i32) -> (i32, i32, i32) {
    %c0_i32 = arith.constant 0 : i32
    %c1_i32 = arith.constant 1 : i32
    %c0_i32_0 = arith.constant 0 : i32
    return %arg0, %c0_i32, %c1_i32 : i32, i32, i32
  }
  func.func @transform_2(%arg0: i32) -> (i32, i32) {
    %c0_i32 = arith.constant 0 : i32
    %c0_i32_0 = arith.constant 0 : i32
    %c0_i32_1 = arith.constant 0 : i32
    return %c0_i32, %c0_i32_0 : i32, i32
  }
  func.func @transform_3(%arg0: i32) -> (i32, i32) {
    %c0_i32 = arith.constant 0 : i32
    %c0_i32_0 = arith.constant 0 : i32
    %c0_i32_1 = arith.constant 0 : i32
    return %c0_i32, %c0_i32_0 : i32, i32
  }
  func.func @transform_4(%arg0: i32) -> (i32, i32) {
    %c0_i32 = arith.constant 0 : i32
    %c0_i32_0 = arith.constant 0 : i32
    %c0_i32_1 = arith.constant 0 : i32
    return %c0_i32, %c0_i32_0 : i32, i32
  }
  func.func @transform_5(%arg0: i32) -> (i32, i32) {
    %c0_i32 = arith.constant 0 : i32
    %c0_i32_0 = arith.constant 0 : i32
    %c0_i32_1 = arith.constant 0 : i32
    return %c0_i32, %c0_i32_0 : i32, i32
  }
  func.func @transform_6(%arg0: i32) -> (i32, i32, i32) {
    %c0_i32 = arith.constant 0 : i32
    %c0_i32_0 = arith.constant 0 : i32
    %c0_i32_1 = arith.constant 0 : i32
    return %arg0, %c0_i32, %c0_i32_0 : i32, i32, i32
  }
}

</mosaic_0001>

<llo_original>
// kernel: tpu_custom_call.1
$region0: #{tpu_custom_call.1}
  #allocation0 [shape = 'u32[]', space=smem, size = 0x4, offset = 0x4, fixed_abs, tag = 'smem constant byte address 0x4 - core index']
  #allocation1 [shape = 'u32[144,128]{1,0:T(1,128)}', space=vmem, size = 0x12000, scoped, tag = 'internal scratch']
  %s0 = inlined_call_operand.hbm [shape: f32[8,16,256], index: 0, kind: input, shape index: {}]
  %s1 = inlined_call_operand.hbm [shape: f32[8,16,256], index: 1, kind: input, shape index: {}]
  %s2 = inlined_call_operand.vmem [shape: f32[1,128], index: 2, kind: input, shape index: {}]
  %s3 = inlined_call_operand.vmem [shape: f32[1,128], index: 3, kind: input, shape index: {}]
  %s4 = inlined_call_operand.vmem [shape: bf16[16,16], index: 4, kind: input, shape index: {}]
  %s5 = inlined_call_operand.vmem [shape: f32[16,1], index: 5, kind: input, shape index: {}]
  %s6 = inlined_call_operand.hbm [shape: f32[8,16,128], index: 6, kind: output, shape index: {}]
  %s7 = sld [smem:[#allocation0]]
  $region65: #{tpu_custom_call.1} parent=0
    _
  %s9 = ssub.s32 1, %s7
  %s10 = scalar_select 0, %s9, %s7
  $region1: #{tpu_custom_call.1} parent=0
    #allocation2 [shape = 'u8[65536]{0}', space=vmem, size = 0x10000, scoped, tag = 'input window, operand 0']
    #allocation3 [shape = 's32[2]{0}', space=sflag, size = 0x8, scoped, tag = 'scoped memory for tpu_custom_call.1']
    #allocation4 [shape = 's32[2]{0}', space=sflag, size = 0x8, scoped, tag = 'scoped memory for tpu_custom_call.1']
    #allocation5 [shape = 'u8[65536]{0}', space=vmem, size = 0x10000, scoped, tag = 'input window, operand 1']
    #allocation6 [shape = 's32[2]{0}', space=sflag, size = 0x8, scoped, tag = 'scoped memory for tpu_custom_call.1']
    #allocation7 [shape = 'u8[65536]{0}', space=vmem, size = 0x10000, scoped, tag = 'output window, operand 0']
    %11 = vsyncpa [#allocation3], 0
    %s12 = scalar_lea.sflag [#allocation3], 1
    %13 = vsyncpa %s12, 0
    %14 = vsyncpa [#allocation6], 0
    %s15 = scalar_lea.sflag [#allocation6], 1
    %16 = vsyncpa %s15, 0
    %17 = vsyncpa [#allocation4], 0
    %s18 = scalar_lea.sflag [#allocation4], 1
    %19 = vsyncpa %s18, 0
    loop: start=0, step=1, limit=4
    $region2: #{tpu_custom_call.1} parent=1 // loop_pre_header
      _
    $region3: #{tpu_custom_call.1} parent=1 // loop_header
      %s21 = sphi 0, %s25
      %p22 = scmp.ge.s32.totalorder %s21, 4
      %s31 = sphi 0, %s33
      %s34 = sphi 0, %s31
      %s35 = sphi 0, %s34
      %s51 = sphi 0, %s35
      %s57 = sphi 0, %s59
      %s60 = sphi 0, %s57
      %s61 = sphi 0, %s60
      %s77 = sphi 0, %s61
      %s81 = sphi 0, %s81
      %s83 = sphi 0, %s81
      %s84 = sphi 0, %s83
      %s98 = sphi 0, %s84
      %s102 = sphi 0, %s102
      %s104 = sphi 0, %s102
      %s105 = sphi 0, %s104
      %s119 = sphi 0, %s105
      %s123 = sphi 0, %s123
      %s125 = sphi 0, %s123
      %s126 = sphi 0, %s125
      %s140 = sphi 0, %s126
      %s144 = sphi 0, %s144
      %s146 = sphi 0, %s144
      %s147 = sphi 0, %s146
      %s161 = sphi 0, %s147
      %s167 = sphi 0, %s169
      %s170 = sphi 0, %s167
      %s171 = sphi 0, %s170
      %s187 = sphi 0, %s171
    $region4: #{tpu_custom_call.1} parent=1 // loop_header_branch
      %24 = sbr.rel (%p22) target = $region8
    $region5: #{tpu_custom_call.1} parent=1 // loop_body
      %s26 = ssub.s32 %s21, 1
      %s27 = ssub.s32 %s21, 2
      %s28 = sadd.s32 %s21, 1
      %s29 = ssub.s32 %s21, %s28
      %p30 = scmp.eq.s32.totalorder %s29, 0
      %s32 = sadd.s32 %s31, 1
      %s33 = scalar_select %p30, %s31, %s32
      %p36 = pneg %p30
      %p37 = scmp.eq.s32.totalorder %s21, 1
      %p38 = por %p36, %p37
      %p39 = scmp.ne.s32.totalorder %s31, %s34
      %p40 = scmp.eq.s32.totalorder %s21, 0
      %p41 = por %p39, %p40
      %p42 = scmp.ne.s32.totalorder %s31, %s34
      %p43 = scmp.eq.s32.totalorder %s26, 1
      %p44 = por %p42, %p43
      %p45 = scmp.ne.s32.totalorder %s34, %s35
      %p46 = scmp.eq.s32.totalorder %s26, 0
      %p47 = por %p45, %p46
      %p48 = scmp.ne.s32.totalorder %s34, %s35
      %p49 = scmp.eq.s32.totalorder %s27, 1
      %p50 = por %p48, %p49
      %p52 = scmp.ne.s32.totalorder %s35, %s51
      %p53 = scmp.eq.s32.totalorder %s27, 0
      %p54 = por %p52, %p53
      %s55 = ssub.s32 %s21, %s28
      %p56 = scmp.eq.s32.totalorder %s55, 0
      %s58 = sadd.s32 %s57, 1
      %s59 = scalar_select %p56, %s57, %s58
      %p62 = pneg %p56
      %p63 = scmp.eq.s32.totalorder %s21, 1
      %p64 = por %p62, %p63
      %p65 = scmp.ne.s32.totalorder %s57, %s60
      %p66 = scmp.eq.s32.totalorder %s21, 0
      %p67 = por %p65, %p66
      %p68 = scmp.ne.s32.totalorder %s57, %s60
      %p69 = scmp.eq.s32.totalorder %s26, 1
      %p70 = por %p68, %p69
      %p71 = scmp.ne.s32.totalorder %s60, %s61
      %p72 = scmp.eq.s32.totalorder %s26, 0
      %p73 = por %p71, %p72
      %p74 = scmp.ne.s32.totalorder %s60, %s61
      %p75 = scmp.eq.s32.totalorder %s27, 1
      %p76 = por %p74, %p75
      %p78 = scmp.ne.s32.totalorder %s61, %s77
      %p79 = scmp.eq.s32.totalorder %s27, 0
      %p80 = por %p78, %p79
      %s82 = sadd.s32 %s81, 1
      %p85 = scmp.eq.s32.totalorder %s21, 1
      %p86 = scmp.ne.s32.totalorder %s81, %s83
      %p87 = scmp.eq.s32.totalorder %s21, 0
      %p88 = por %p86, %p87
      %p89 = scmp.ne.s32.totalorder %s81, %s83
      %p90 = scmp.eq.s32.totalorder %s26, 1
      %p91 = por %p89, %p90
      %p92 = scmp.ne.s32.totalorder %s83, %s84
      %p93 = scmp.eq.s32.totalorder %s26, 0
      %p94 = por %p92, %p93
      %p95 = scmp.ne.s32.totalorder %s83, %s84
      %p96 = scmp.eq.s32.totalorder %s27, 1
      %p97 = por %p95, %p96
      %p99 = scmp.ne.s32.totalorder %s84, %s98
      %p100 = scmp.eq.s32.totalorder %s27, 0
      %p101 = por %p99, %p100
      %s103 = sadd.s32 %s102, 1
      %p106 = scmp.eq.s32.totalorder %s21, 1
      %p107 = scmp.ne.s32.totalorder %s102, %s104
      %p108 = scmp.eq.s32.totalorder %s21, 0
      %p109 = por %p107, %p108
      %p110 = scmp.ne.s32.totalorder %s102, %s104
      %p111 = scmp.eq.s32.totalorder %s26, 1
      %p112 = por %p110, %p111
      %p113 = scmp.ne.s32.totalorder %s104, %s105
      %p114 = scmp.eq.s32.totalorder %s26, 0
      %p115 = por %p113, %p114
      %p116 = scmp.ne.s32.totalorder %s104, %s105
      %p117 = scmp.eq.s32.totalorder %s27, 1
      %p118 = por %p116, %p117
      %p120 = scmp.ne.s32.totalorder %s105, %s119
      %p121 = scmp.eq.s32.totalorder %s27, 0
      %p122 = por %p120, %p121
      %s124 = sadd.s32 %s123, 1
      %p127 = scmp.eq.s32.totalorder %s21, 1
      %p128 = scmp.ne.s32.totalorder %s123, %s125
      %p129 = scmp.eq.s32.totalorder %s21, 0
      %p130 = por %p128, %p129
      %p131 = scmp.ne.s32.totalorder %s123, %s125
      %p132 = scmp.eq.s32.totalorder %s26, 1
      %p133 = por %p131, %p132
      %p134 = scmp.ne.s32.totalorder %s125, %s126
      %p135 = scmp.eq.s32.totalorder %s26, 0
      %p136 = por %p134, %p135
      %p137 = scmp.ne.s32.totalorder %s125, %s126
      %p138 = scmp.eq.s32.totalorder %s27, 1
      %p139 = por %p137, %p138
      %p141 = scmp.ne.s32.totalorder %s126, %s140
      %p142 = scmp.eq.s32.totalorder %s27, 0
      %p143 = por %p141, %p142
      %s145 = sadd.s32 %s144, 1
      %p148 = scmp.eq.s32.totalorder %s21, 1
      %p149 = scmp.ne.s32.totalorder %s144, %s146
      %p150 = scmp.eq.s32.totalorder %s21, 0
      %p151 = por %p149, %p150
      %p152 = scmp.ne.s32.totalorder %s144, %s146
      %p153 = scmp.eq.s32.totalorder %s26, 1
      %p154 = por %p152, %p153
      %p155 = scmp.ne.s32.totalorder %s146, %s147
      %p156 = scmp.eq.s32.totalorder %s26, 0
      %p157 = por %p155, %p156
      %p158 = scmp.ne.s32.totalorder %s146, %s147
      %p159 = scmp.eq.s32.totalorder %s27, 1
      %p160 = por %p158, %p159
      %p162 = scmp.ne.s32.totalorder %s147, %s161
      %p163 = scmp.eq.s32.totalorder %s27, 0
      %p164 = por %p162, %p163
      %s165 = ssub.s32 %s21, %s28
      %p166 = scmp.eq.s32.totalorder %s165, 0
      %s168 = sadd.s32 %s167, 1
      %s169 = scalar_select %p166, %s167, %s168
      %p172 = pneg %p166
      %p173 = scmp.eq.s32.totalorder %s21, 1
      %p174 = por %p172, %p173
      %p175 = scmp.ne.s32.totalorder %s167, %s170
      %p176 = scmp.eq.s32.totalorder %s21, 0
      %p177 = por %p175, %p176
      %p178 = scmp.ne.s32.totalorder %s167, %s170
      %p179 = scmp.eq.s32.totalorder %s26, 1
      %p180 = por %p178, %p179
      %p181 = scmp.ne.s32.totalorder %s170, %s171
      %p182 = scmp.eq.s32.totalorder %s26, 0
      %p183 = por %p181, %p182
      %p184 = scmp.ne.s32.totalorder %s170, %s171
      %p185 = scmp.eq.s32.totalorder %s27, 1
      %p186 = por %p184, %p185
      %p188 = scmp.ne.s32.totalorder %s171, %s187
      %p189 = scmp.eq.s32.totalorder %s27, 0
      %p190 = por %p188, %p189
      %p191 = scmp.le.s32.totalorder 1, %s21
      %p192 = scmp.lt.s32.totalorder %s21, 3
      %p193 = pnand %p191, %p192
      %p194 = pneg %p193
      // Predicated region
      $region9: #{tpu_custom_call.1} parent=5 // pred_check
        _
      $region10: #{tpu_custom_call.1} parent=5 // pred_check_branch
        %196 = sbr.rel (%p193) target = $region12
      $region11: #{tpu_custom_call.1} parent=5 // pred_region
        %s197 = ssub.s32 %s21, 1
        // Predicated region
        $region13: #{tpu_custom_call.1} parent=11 // pred_check
          %p198 = pneg %p94
        $region14: #{tpu_custom_call.1} parent=11 // pred_check_branch
          %200 = sbr.rel (%p198) target = $region16
        $region15: #{tpu_custom_call.1} parent=11 // pred_region
          _
        $region16: #{tpu_custom_call.1} parent=11 // pred_fallthru
          _
        // Predicated region
        $region17: #{tpu_custom_call.1} parent=11 // pred_check
          %p201 = pneg %p115
        $region18: #{tpu_custom_call.1} parent=11 // pred_check_branch
          %203 = sbr.rel (%p201) target = $region20
        $region19: #{tpu_custom_call.1} parent=11 // pred_region
          _
        $region20: #{tpu_custom_call.1} parent=11 // pred_fallthru
          _
        // Predicated region
        $region21: #{tpu_custom_call.1} parent=11 // pred_check
          %p204 = pneg %p136
        $region22: #{tpu_custom_call.1} parent=11 // pred_check_branch
          %206 = sbr.rel (%p204) target = $region24
        $region23: #{tpu_custom_call.1} parent=11 // pred_region
          _
        $region24: #{tpu_custom_call.1} parent=11 // pred_fallthru
          _
        // Predicated region
        $region25: #{tpu_custom_call.1} parent=11 // pred_check
          %p207 = pneg %p157
        $region26: #{tpu_custom_call.1} parent=11 // pred_check_branch
          %209 = sbr.rel (%p207) target = $region28
        $region27: #{tpu_custom_call.1} parent=11 // pred_region
          _
        $region28: #{tpu_custom_call.1} parent=11 // pred_fallthru
          _
      $region12: #{tpu_custom_call.1} parent=5 // pred_fallthru
        _
      %p210 = scmp.lt.s32.totalorder %s21, 2
      // Predicated region
      $region29: #{tpu_custom_call.1} parent=5 // pred_check
        %p211 = pneg %p210
      $region30: #{tpu_custom_call.1} parent=5 // pred_check_branch
        %213 = sbr.rel (%p211) target = $region32
      $region31: #{tpu_custom_call.1} parent=5 // pred_region
        // Predicated region
        $region33: #{tpu_custom_call.1} parent=31 // pred_check
          %p214 = pneg %p41
        $region34: #{tpu_custom_call.1} parent=31 // pred_check_branch
          %216 = sbr.rel (%p214) target = $region36
        $region35: #{tpu_custom_call.1} parent=31 // pred_region
          %s217 = sand.u32 %s31, 1
          %s218 = scalar_lea.sflag [#allocation3], %s217
          %s219 = sand.u32 %s31, 1
          %s220 = smul.addr %s219, 64
          %s221 = scalar_lea.vmem [#allocation2], %s220
          %s222 = smul.u32 4, %s21
          %s224 = ssub.s32 1024, 1024
          %225 = vsyncadd %s218, %s224
          %s226 = smul.addr %s222, 4
          %s227 = smul.addr %s226, 128
          %s228 = scalar_lea.hbm %s0, %s227
          %s229 = sshll.u32 %s221, 4
          %s230 = int_to_ptr.vmem [resolvable:$true] %s229
          %235 = dma.hbm_to_vmem [thread:$0]  %s228, 1024, %s230, %s218, 256, 128, 8
        $region36: #{tpu_custom_call.1} parent=31 // pred_fallthru
          _
        // Predicated region
        $region37: #{tpu_custom_call.1} parent=31 // pred_check
          %p236 = pneg %p67
        $region38: #{tpu_custom_call.1} parent=31 // pred_check_branch
          %238 = sbr.rel (%p236) target = $region40
        $region39: #{tpu_custom_call.1} parent=31 // pred_region
          %s239 = sand.u32 %s57, 1
          %s240 = scalar_lea.sflag [#allocation6], %s239
          %s241 = sand.u32 %s57, 1
          %s242 = smul.addr %s241, 64
          %s243 = scalar_lea.vmem [#allocation5], %s242
          %s244 = smul.u32 4, %s21
          %s246 = ssub.s32 1024, 1024
          %247 = vsyncadd %s240, %s246
          %s248 = smul.addr %s244, 4
          %s249 = sadd.s32 1, %s248
          %s250 = smul.addr %s249, 128
          %s251 = scalar_lea.hbm %s1, %s250
          %s252 = sshll.u32 %s243, 4
          %s253 = int_to_ptr.vmem [resolvable:$true] %s252
          %258 = dma.hbm_to_vmem [thread:$0]  %s251, 1024, %s253, %s240, 256, 128, 8
        $region40: #{tpu_custom_call.1} parent=31 // pred_fallthru
          _
      $region32: #{tpu_custom_call.1} parent=5 // pred_fallthru
        _
      %p259 = scmp.le.s32.totalorder 1, %s21
      %p260 = scmp.lt.s32.totalorder %s21, 3
      %p261 = pnand %p259, %p260
      %p262 = pneg %p261
      // Predicated region
      $region41: #{tpu_custom_call.1} parent=5 // pred_check
        _
      $region42: #{tpu_custom_call.1} parent=5 // pred_check_branch
        %264 = sbr.rel (%p261) target = $region44
      $region43: #{tpu_custom_call.1} parent=5 // pred_region
        %s265 = ssub.s32 %s21, 1
        %s266 = sand.u32 %s34, 1
        %s267 = scalar_lea.sflag [#allocation3], %s266
        %s268 = sand.u32 %s34, 1
        %s269 = smul.addr %s268, 64
        %s270 = scalar_lea.vmem [#allocation2], %s269
        // Predicated region
        $region45: #{tpu_custom_call.1} parent=43 // pred_check
          %p271 = pneg %p47
        $region46: #{tpu_custom_call.1} parent=43 // pred_check_branch
          %273 = sbr.rel (%p271) target = $region48
        $region47: #{tpu_custom_call.1} parent=43 // pred_region
          %274 = dma.done %s267, 1024
        $region48: #{tpu_custom_call.1} parent=43 // pred_fallthru
          _
        %s275 = sand.u32 %s60, 1
        %s276 = scalar_lea.sflag [#allocation6], %s275
        %s277 = sand.u32 %s60, 1
        %s278 = smul.addr %s277, 64
        %s279 = scalar_lea.vmem [#allocation5], %s278
        // Predicated region
        $region49: #{tpu_custom_call.1} parent=43 // pred_check
          %p280 = pneg %p73
        $region50: #{tpu_custom_call.1} parent=43 // pred_check_branch
          %282 = sbr.rel (%p280) target = $region52
        $region51: #{tpu_custom_call.1} parent=43 // pred_region
          %283 = dma.done %s276, 1024
        $region52: #{tpu_custom_call.1} parent=43 // pred_fallthru
          _
        %s284 = sand.u32 %s34, 1
        %s285 = scalar_lea.sflag [#allocation3], %s284
        %s286 = sand.u32 %s34, 1
        %s287 = smul.addr %s286, 64
        %s288 = scalar_lea.vmem [#allocation2], %s287
        %p289 = pneg %p47
        %p290 = pneg %p44
        %s291 = sand.u32 %s60, 1
        %s292 = scalar_lea.sflag [#allocation6], %s291
        %s293 = sand.u32 %s60, 1
        %s294 = smul.addr %s293, 64
        %s295 = scalar_lea.vmem [#allocation5], %s294
        %p296 = pneg %p73
        %p297 = pneg %p70
        %p298 = pneg %p94
        %p299 = pneg %p91
        %p300 = pneg %p115
        %p301 = pneg %p112
        %p302 = pneg %p136
        %p303 = pneg %p133
        %p304 = pneg %p157
        %p305 = pneg %p154
        %p306 = pneg %p183
        %p307 = pneg %p180
        %s308 = sand.u32 %s170, 1
        %s309 = scalar_lea.sflag [#allocation4], %s308
        %s310 = sand.u32 %s170, 1
        %s311 = smul.addr %s310, 64
        %s312 = scalar_lea.vmem [#allocation7], %s311
        %s313 = smul.u32 4, %s26
        %s314 = smul.u32 4, %s26
        %s315 = smul.u32 4, %s26
        %v317 = vld [vmem:[%s4] sm:$0xf]
        %v318 = vld [vmem:[%s4 + $0x4] sm:$0xf]
        %v319 = vld [vmem:[%s2] sm:$0x1]
        %v320 = vld [vmem:[%s3] sm:$0x1]
        %v321 = vld [vmem:[%s5] sm:$0xff]
        %v322 = vld [vmem:[%s5 + $0x8] sm:$0xff]
        %v323 = vld [vmem:[%s279] sm:$0xff]
        %v324 = vld [vmem:[%s279 + $0x8] sm:$0xff]
        %325 = vadd.xlane.f32.xlu0 %v323
        %v326 = vpop.xlane.xlu0 %325
        %327 = vadd.xlane.f32.xlu0 %v324
        %v328 = vpop.xlane.xlu0 %327
        %v329 = vrcp.pop 128.0
        %v330 = vmul.f32 %v326, %v329
        %v331 = vmul.f32 %v328, %v329
        %v332 = vsub.f32 %v323, %v330
        %v333 = vsub.f32 %v324, %v331
        %v334 = vmul.f32 %v332, %v332
        %v335 = vmul.f32 %v333, %v333
        %336 = vadd.xlane.f32.xlu0 %v334
        %v337 = vpop.xlane.xlu0 %336
        %338 = vadd.xlane.f32.xlu0 %v335
        %v339 = vpop.xlane.xlu0 %338
        %v340 = vmul.f32 %v337, %v329
        %v341 = vmul.f32 %v339, %v329
        %v342 = vadd.f32 %v340, 1e-05
        %v343 = vadd.f32 %v341, 1e-05
        %v344 = vrsqrt.pop %v342
        %v345 = vrsqrt.pop %v343
        %v346 = vmul.f32 %v332, %v344
        %v347 = vmul.f32 %v333, %v345
        %v349 = vlaneseq
        %v350 = vshrl.u32 %v349, 7
        %v351 = vsub.s32 0, %v350
        %v352 = vrot.slane %v319, %v351
        %v354 = vmul.f32 %v346, %v352
        %v355 = vmul.f32 %v347, %v352
        %v357 = vlaneseq
        %v358 = vshrl.u32 %v357, 7
        %v359 = vsub.s32 0, %v358
        %v360 = vrot.slane %v320, %v359
        %v362 = vadd.f32 %v354, %v360
        %v363 = vadd.f32 %v355, %v360
        %v364 = vpack.c.bf16 %v363, %v362
        %366 = vset.pattern.permute.xlu0 0
        %367 = vperm.xlu0 %366, %v321
        %v368 = vpop.permute.xlu0 %367
        %371 = vset.pattern.permute.xlu0 0
        %372 = vperm.xlu0 %371, %v322
        %v373 = vpop.permute.xlu0 %372
        %v377 = vunpack.c.l.b16 %v317
        %v378 = vunpack.c.l.b16 %v318
        %v379 = vpack.c.b16 %v378, %v377
        %vm380 = vcmask 130048
        %v382 = vsel %vm380, %v379, 0
        %384 = vmatprep.subr.bf16.mxu0 0
        %385 = vmatpush1.bf16.msra.mxu0 %v364
        %386 = vmatprep.subr.bf16.mxu0 0
        %387 = vmatpush1.bf16.msra.mxu0 0
        %388 = vmatprep.subr.bf16.mxu0 0
        %389 = vmatpush1.bf16.msra.mxu0 0
        %390 = vmatprep.subr.bf16.mxu0 0
        %391 = vmatpush1.bf16.msra.mxu0 0
        %392 = vmatprep.subr.bf16.mxu0 0
        %393 = vmatpush1.bf16.msra.mxu0 0
        %394 = vmatprep.subr.bf16.mxu0 0
        %395 = vmatpush1.bf16.msra.mxu0 0
        %396 = vmatprep.subr.bf16.mxu0 0
        %397 = vmatpush1.bf16.msra.mxu0 0
        %398 = vmatprep.subr.bf16.mxu0 0
        %399 = vmatpush1.bf16.msra.mxu0 0
        %400 = vmatprep.subr.bf16.mxu0 0
        %401 = vmatpush1.bf16.msra.mxu0 0
        %402 = vmatprep.subr.bf16.mxu0 0
        %403 = vmatpush1.bf16.msra.mxu0 0
        %404 = vmatprep.subr.bf16.mxu0 0
        %405 = vmatpush1.bf16.msra.mxu0 0
        %406 = vmatprep.subr.bf16.mxu0 0
        %407 = vmatpush1.bf16.msra.mxu0 0
        %408 = vmatprep.subr.bf16.mxu0 0
        %409 = vmatpush1.bf16.msra.mxu0 0
        %410 = vmatprep.subr.bf16.mxu0 0
        %411 = vmatpush1.bf16.msra.mxu0 0
        %412 = vmatprep.subr.bf16.mxu0 0
        %413 = vmatpush1.bf16.msra.mxu0 0
        %414 = vmatprep.subr.bf16.mxu0 0
        %415 = vmatpush1.bf16.msra.mxu0 0
        %416 = vmatprep.mubr.bf16.mxu0 0
        %417 = vmatmul.mubr.bf16.gmra.mrb[0].mxu0 %v382
        %v418 = vpop.f32.mrb[0].mxu0
        %v419 = vadd.f32 %v368, %v418
        %v420 = vpop.f32.mrb[0].mxu0
        %v421 = vpop.f32.mrb[0].mxu0
        %v422 = vadd.f32 %v373, %v421
        %v423 = vpop.f32.mrb[0].mxu0
        %424 = vdwg.mxu0
        %v425 = vld [vmem:[%s270] sm:$0xff]
        %v426 = vld [vmem:[%s270 + $0x8] sm:$0xff]
        %v427 = vmul.f32 %v425, %v419
        %v428 = vmul.f32 %v426, %v422
        %429 = vst [vmem:[%s312] sm:$0xff] %v427
        %430 = vst [vmem:[%s312 + $0x8] sm:$0xff] %v428
        %s431 = scalar_lea.vmem %s279, 16 [#allocation5]
        %v432 = vld [vmem:[%s431] sm:$0xff]
        %v433 = vld [vmem:[%s431 + $0x8] sm:$0xff]
        %434 = vadd.xlane.f32.xlu0 %v432
        %v435 = vpop.xlane.xlu0 %434
        %436 = vadd.xlane.f32.xlu0 %v433
        %v437 = vpop.xlane.xlu0 %436
        %v438 = vmul.f32 %v435, %v329
        %v439 = vmul.f32 %v437, %v329
        %v440 = vsub.f32 %v432, %v438
        %v441 = vsub.f32 %v433, %v439
        %v442 = vmul.f32 %v440, %v440
        %v443 = vmul.f32 %v441, %v441
        %444 = vadd.xlane.f32.xlu0 %v442
        %v445 = vpop.xlane.xlu0 %444
        %446 = vadd.xlane.f32.xlu0 %v443
        %v447 = vpop.xlane.xlu0 %446
        %v448 = vmul.f32 %v445, %v329
        %v449 = vmul.f32 %v447, %v329
        %v450 = vadd.f32 %v448, 1e-05
        %v451 = vadd.f32 %v449, 1e-05
        %v452 = vrsqrt.pop %v450
        %v453 = vrsqrt.pop %v451
        %v454 = vmul.f32 %v440, %v452
        %v455 = vmul.f32 %v441, %v453
        %v456 = vmul.f32 %v454, %v352
        %v457 = vmul.f32 %v455, %v352
        %v458 = vadd.f32 %v456, %v360
        %v459 = vadd.f32 %v457, %v360
        %v460 = vpack.c.bf16 %v459, %v458
        %461 = vmatprep.subr.bf16.mxu0 0
        %462 = vmatpush1.bf16.msra.mxu0 %v460
        %463 = vmatprep.subr.bf16.mxu0 0
        %464 = vmatpush1.bf16.msra.mxu0 0
        %465 = vmatprep.subr.bf16.mxu0 0
        %466 = vmatpush1.bf16.msra.mxu0 0
        %467 = vmatprep.subr.bf16.mxu0 0
        %468 = vmatpush1.bf16.msra.mxu0 0
        %469 = vmatprep.subr.bf16.mxu0 0
        %470 = vmatpush1.bf16.msra.mxu0 0
        %471 = vmatprep.subr.bf16.mxu0 0
        %472 = vmatpush1.bf16.msra.mxu0 0
        %473 = vmatprep.subr.bf16.mxu0 0
        %474 = vmatpush1.bf16.msra.mxu0 0
        %475 = vmatprep.subr.bf16.mxu0 0
        %476 = vmatpush1.bf16.msra.mxu0 0
        %477 = vmatprep.subr.bf16.mxu0 0
        %478 = vmatpush1.bf16.msra.mxu0 0
        %479 = vmatprep.subr.bf16.mxu0 0
        %480 = vmatpush1.bf16.msra.mxu0 0
        %481 = vmatprep.subr.bf16.mxu0 0
        %482 = vmatpush1.bf16.msra.mxu0 0
        %483 = vmatprep.subr.bf16.mxu0 0
        %484 = vmatpush1.bf16.msra.mxu0 0
        %485 = vmatprep.subr.bf16.mxu0 0
        %486 = vmatpush1.bf16.msra.mxu0 0
        %487 = vmatprep.subr.bf16.mxu0 0
        %488 = vmatpush1.bf16.msra.mxu0 0
        %489 = vmatprep.subr.bf16.mxu0 0
        %490 = vmatpush1.bf16.msra.mxu0 0
        %491 = vmatprep.subr.bf16.mxu0 0
        %492 = vmatpush1.bf16.msra.mxu0 0
        %493 = vmatprep.mubr.bf16.mxu0 0
        %494 = vmatmul.mubr.bf16.gmra.mrb[0].mxu0 %v382
        %v495 = vpop.f32.mrb[0].mxu0
        %v496 = vadd.f32 %v368, %v495
        %v497 = vpop.f32.mrb[0].mxu0
        %v498 = vpop.f32.mrb[0].mxu0
        %v499 = vadd.f32 %v373, %v498
        %v500 = vpop.f32.mrb[0].mxu0
        %501 = vdwg.mxu0
        %s502 = scalar_lea.vmem %s270, 16 [#allocation2]
        %v503 = vld [vmem:[%s502] sm:$0xff]
        %v504 = vld [vmem:[%s502 + $0x8] sm:$0xff]
        %v505 = vmul.f32 %v503, %v496
        %v506 = vmul.f32 %v504, %v499
        %s507 = scalar_lea.vmem %s312, 16 [#allocation7]
        %508 = vst [vmem:[%s507] sm:$0xff] %v505
        %509 = vst [vmem:[%s507 + $0x8] sm:$0xff] %v506
        %s510 = scalar_lea.vmem %s279, 32 [#allocation5]
        %v511 = vld [vmem:[%s510] sm:$0xff]
        %v512 = vld [vmem:[%s510 + $0x8] sm:$0xff]
        %513 = vadd.xlane.f32.xlu0 %v511
        %v514 = vpop.xlane.xlu0 %513
        %515 = vadd.xlane.f32.xlu0 %v512
        %v516 = vpop.xlane.xlu0 %515
        %v517 = vmul.f32 %v514, %v329
        %v518 = vmul.f32 %v516, %v329
        %v519 = vsub.f32 %v511, %v517
        %v520 = vsub.f32 %v512, %v518
        %v521 = vmul.f32 %v519, %v519
        %v522 = vmul.f32 %v520, %v520
        %523 = vadd.xlane.f32.xlu0 %v521
        %v524 = vpop.xlane.xlu0 %523
        %525 = vadd.xlane.f32.xlu0 %v522
        %v526 = vpop.xlane.xlu0 %525
        %v527 = vmul.f32 %v524, %v329
        %v528 = vmul.f32 %v526, %v329
        %v529 = vadd.f32 %v527, 1e-05
        %v530 = vadd.f32 %v528, 1e-05
        %v531 = vrsqrt.pop %v529
        %v532 = vrsqrt.pop %v530
        %v533 = vmul.f32 %v519, %v531
        %v534 = vmul.f32 %v520, %v532
        %v535 = vmul.f32 %v533, %v352
        %v536 = vmul.f32 %v534, %v352
        %v537 = vadd.f32 %v535, %v360
        %v538 = vadd.f32 %v536, %v360
        %v539 = vpack.c.bf16 %v538, %v537
        %540 = vmatprep.subr.bf16.mxu0 0
        %541 = vmatpush1.bf16.msra.mxu0 %v539
        %542 = vmatprep.subr.bf16.mxu0 0
        %543 = vmatpush1.bf16.msra.mxu0 0
        %544 = vmatprep.subr.bf16.mxu0 0
        %545 = vmatpush1.bf16.msra.mxu0 0
        %546 = vmatprep.subr.bf16.mxu0 0
        %547 = vmatpush1.bf16.msra.mxu0 0
        %548 = vmatprep.subr.bf16.mxu0 0
        %549 = vmatpush1.bf16.msra.mxu0 0
        %550 = vmatprep.subr.bf16.mxu0 0
        %551 = vmatpush1.bf16.msra.mxu0 0
        %552 = vmatprep.subr.bf16.mxu0 0
        %553 = vmatpush1.bf16.msra.mxu0 0
        %554 = vmatprep.subr.bf16.mxu0 0
        %555 = vmatpush1.bf16.msra.mxu0 0
        %556 = vmatprep.subr.bf16.mxu0 0
        %557 = vmatpush1.bf16.msra.mxu0 0
        %558 = vmatprep.subr.bf16.mxu0 0
        %559 = vmatpush1.bf16.msra.mxu0 0
        %560 = vmatprep.subr.bf16.mxu0 0
        %561 = vmatpush1.bf16.msra.mxu0 0
        %562 = vmatprep.subr.bf16.mxu0 0
        %563 = vmatpush1.bf16.msra.mxu0 0
        %564 = vmatprep.subr.bf16.mxu0 0
        %565 = vmatpush1.bf16.msra.mxu0 0
        %566 = vmatprep.subr.bf16.mxu0 0
        %567 = vmatpush1.bf16.msra.mxu0 0
        %568 = vmatprep.subr.bf16.mxu0 0
        %569 = vmatpush1.bf16.msra.mxu0 0
        %570 = vmatprep.subr.bf16.mxu0 0
        %571 = vmatpush1.bf16.msra.mxu0 0
        %572 = vmatprep.mubr.bf16.mxu0 0
        %573 = vmatmul.mubr.bf16.gmra.mrb[0].mxu0 %v382
        %v574 = vpop.f32.mrb[0].mxu0
        %v575 = vadd.f32 %v368, %v574
        %v576 = vpop.f32.mrb[0].mxu0
        %v577 = vpop.f32.mrb[0].mxu0
        %v578 = vadd.f32 %v373, %v577
        %v579 = vpop.f32.mrb[0].mxu0
        %580 = vdwg.mxu0
        %s581 = scalar_lea.vmem %s270, 32 [#allocation2]
        %v582 = vld [vmem:[%s581] sm:$0xff]
        %v583 = vld [vmem:[%s581 + $0x8] sm:$0xff]
        %v584 = vmul.f32 %v582, %v575
        %v585 = vmul.f32 %v583, %v578
        %s586 = scalar_lea.vmem %s312, 32 [#allocation7]
        %587 = vst [vmem:[%s586] sm:$0xff] %v584
        %588 = vst [vmem:[%s586 + $0x8] sm:$0xff] %v585
        %s589 = scalar_lea.vmem %s279, 48 [#allocation5]
        %v590 = vld [vmem:[%s589] sm:$0xff]
        %v591 = vld [vmem:[%s589 + $0x8] sm:$0xff]
        %592 = vadd.xlane.f32.xlu0 %v590
        %v593 = vpop.xlane.xlu0 %592
        %594 = vadd.xlane.f32.xlu0 %v591
        %v595 = vpop.xlane.xlu0 %594
        %v596 = vmul.f32 %v593, %v329
        %v597 = vmul.f32 %v595, %v329
        %v598 = vsub.f32 %v590, %v596
        %v599 = vsub.f32 %v591, %v597
        %v600 = vmul.f32 %v598, %v598
        %v601 = vmul.f32 %v599, %v599
        %602 = vadd.xlane.f32.xlu0 %v600
        %v603 = vpop.xlane.xlu0 %602
        %604 = vadd.xlane.f32.xlu0 %v601
        %v605 = vpop.xlane.xlu0 %604
        %v606 = vmul.f32 %v603, %v329
        %v607 = vmul.f32 %v605, %v329
        %v608 = vadd.f32 %v606, 1e-05
        %v609 = vadd.f32 %v607, 1e-05
        %v610 = vrsqrt.pop %v608
        %v611 = vrsqrt.pop %v609
        %v612 = vmul.f32 %v598, %v610
        %v613 = vmul.f32 %v599, %v611
        %v614 = vmul.f32 %v612, %v352
        %v615 = vmul.f32 %v613, %v352
        %v616 = vadd.f32 %v614, %v360
        %v617 = vadd.f32 %v615, %v360
        %v618 = vpack.c.bf16 %v617, %v616
        %619 = vmatprep.subr.bf16.mxu0 0
        %620 = vmatpush1.bf16.msra.mxu0 %v618
        %621 = vmatprep.subr.bf16.mxu0 0
        %622 = vmatpush1.bf16.msra.mxu0 0
        %623 = vmatprep.subr.bf16.mxu0 0
        %624 = vmatpush1.bf16.msra.mxu0 0
        %625 = vmatprep.subr.bf16.mxu0 0
        %626 = vmatpush1.bf16.msra.mxu0 0
        %627 = vmatprep.subr.bf16.mxu0 0
        %628 = vmatpush1.bf16.msra.mxu0 0
        %629 = vmatprep.subr.bf16.mxu0 0
        %630 = vmatpush1.bf16.msra.mxu0 0
        %631 = vmatprep.subr.bf16.mxu0 0
        %632 = vmatpush1.bf16.msra.mxu0 0
        %633 = vmatprep.subr.bf16.mxu0 0
        %634 = vmatpush1.bf16.msra.mxu0 0
        %635 = vmatprep.subr.bf16.mxu0 0
        %636 = vmatpush1.bf16.msra.mxu0 0
        %637 = vmatprep.subr.bf16.mxu0 0
        %638 = vmatpush1.bf16.msra.mxu0 0
        %639 = vmatprep.subr.bf16.mxu0 0
        %640 = vmatpush1.bf16.msra.mxu0 0
        %641 = vmatprep.subr.bf16.mxu0 0
        %642 = vmatpush1.bf16.msra.mxu0 0
        %643 = vmatprep.subr.bf16.mxu0 0
        %644 = vmatpush1.bf16.msra.mxu0 0
        %645 = vmatprep.subr.bf16.mxu0 0
        %646 = vmatpush1.bf16.msra.mxu0 0
        %647 = vmatprep.subr.bf16.mxu0 0
        %648 = vmatpush1.bf16.msra.mxu0 0
        %649 = vmatprep.subr.bf16.mxu0 0
        %650 = vmatpush1.bf16.msra.mxu0 0
        %651 = vmatprep.mubr.bf16.mxu0 0
        %652 = vmatmul.mubr.bf16.gmra.mrb[0].mxu0 %v382
        %v653 = vpop.f32.mrb[0].mxu0
        %v654 = vadd.f32 %v368, %v653
        %v655 = vpop.f32.mrb[0].mxu0
        %v656 = vpop.f32.mrb[0].mxu0
        %v657 = vadd.f32 %v373, %v656
        %v658 = vpop.f32.mrb[0].mxu0
        %659 = vdwg.mxu0
        %s660 = scalar_lea.vmem %s270, 48 [#allocation2]
        %v661 = vld [vmem:[%s660] sm:$0xff]
        %v662 = vld [vmem:[%s660 + $0x8] sm:$0xff]
        %v663 = vmul.f32 %v661, %v654
        %v664 = vmul.f32 %v662, %v657
        %s665 = scalar_lea.vmem %s312, 48 [#allocation7]
        %666 = vst [vmem:[%s665] sm:$0xff] %v663
        %667 = vst [vmem:[%s665 + $0x8] sm:$0xff] %v664
        %s668 = sand.u32 %s170, 1
        %s669 = scalar_lea.sflag [#allocation4], %s668
        %s670 = sand.u32 %s170, 1
        %s671 = smul.addr %s670, 64
        %s672 = scalar_lea.vmem [#allocation7], %s671
        // Predicated region
        $region53: #{tpu_custom_call.1} parent=43 // pred_check
          %p673 = pneg %p180
        $region54: #{tpu_custom_call.1} parent=43 // pred_check_branch
          %675 = sbr.rel (%p673) target = $region56
        $region55: #{tpu_custom_call.1} parent=43 // pred_region
          %s676 = smul.u32 4, %s26
          %s678 = ssub.s32 1024, 1024
          %679 = vsyncadd %s669, %s678
          %s680 = smul.addr %s676, 2
          %s681 = smul.addr %s680, 128
          %s682 = scalar_lea.hbm %s6, %s681
          %s683 = sshll.u32 %s672, 4
          %s684 = int_to_ptr.vmem [resolvable:$true] %s683
          %689 = dma.vmem_to_hbm [thread:$0]  %s684, 1024, %s682, %s669, 128, 128, 8
        $region56: #{tpu_custom_call.1} parent=43 // pred_fallthru
          _
      $region44: #{tpu_custom_call.1} parent=5 // pred_fallthru
        _
      %p690 = scmp.le.s32.totalorder 2, %s21
      // Predicated region
      $region57: #{tpu_custom_call.1} parent=5 // pred_check
        %p691 = pneg %p690
      $region58: #{tpu_custom_call.1} parent=5 // pred_check_branch
        %693 = sbr.rel (%p691) target = $region60
      $region59: #{tpu_custom_call.1} parent=5 // pred_region
        %s694 = ssub.s32 %s21, 2
        // Predicated region
        $region61: #{tpu_custom_call.1} parent=59 // pred_check
          %p695 = pneg %p186
        $region62: #{tpu_custom_call.1} parent=59 // pred_check_branch
          %697 = sbr.rel (%p695) target = $region64
        $region63: #{tpu_custom_call.1} parent=59 // pred_region
          %s698 = sand.u32 %s171, 1
          %s699 = scalar_lea.sflag [#allocation4], %s698
          %s700 = sand.u32 %s171, 1
          %s701 = smul.addr %s700, 64
          %s702 = scalar_lea.vmem [#allocation7], %s701
          %703 = dma.done %s699, 1024
        $region64: #{tpu_custom_call.1} parent=59 // pred_fallthru
          _
      $region60: #{tpu_custom_call.1} parent=5 // pred_fallthru
        _
    $region6: #{tpu_custom_call.1} parent=1 // loop_footer
      %s25 = sadd.s32 1, %s21
    $region7: #{tpu_custom_call.1} parent=1 // loop_footer_branch
      %20 = sbr.rel target = $region3
    $region8: #{tpu_custom_call.1} parent=1 // loop_exit
      _
    %704 = vsyncpa [#allocation3], 1
    %s705 = scalar_lea.sflag [#allocation3], 1
    %706 = vsyncpa %s705, 1
    %707 = vsyncpa [#allocation6], 1
    %s708 = scalar_lea.sflag [#allocation6], 1
    %709 = vsyncpa %s708, 1
    %710 = vsyncpa [#allocation4], 1
    %s711 = scalar_lea.sflag [#allocation4], 1
    %712 = vsyncpa %s711, 1

</llo_original>
